<compile_context>
chip_gen: v5e
topology: v5e:2x2
jax: 0.10.0
libtpu: 0.0.40
codegen_flags: <defaults>
</compile_context>

<pallas_src>
import functools

import jax
import jax.numpy as jnp
from jax.experimental import pallas as pl
from jax.experimental.pallas import tpu as pltpu

_LANE = 128      # lane width: pad output features to a multiple of this
_SUBLANE = 8     # f32 sublane: pad batch tiles to a multiple of this
_MAX_TM = 512    # batch tile size cap (amortizes ~0.35us/step, fits VMEM easily)
_VPU_K_MAX = 16  # goal_dim at or below this -> unrolled VPU FMA instead of MXU


def _round_up(x, m):
    return (x + m - 1) // m * m


def prepare_goal_encoder_params(weight, bias):
    """One-time parameter prep (call at init, NOT per forward).

    weight: [output_size, goal_dim]  (PyTorch nn.Linear layout)
    bias:   [output_size]
    Returns (w_t_padded [goal_dim, Do_pad], bias_padded [1, Do_pad], output_size)
    with Do_pad rounded up to a multiple of 128 (zero-padded columns).
    """
    Do, Dg = weight.shape
    Do_pad = _round_up(Do, _LANE)
    w_t = jnp.zeros((Dg, Do_pad), jnp.float32).at[:, :Do].set(
        weight.T.astype(jnp.float32))
    b2d = jnp.zeros((1, Do_pad), jnp.float32).at[:, :Do].set(
        bias.astype(jnp.float32))
    return w_t, b2d, Do


def _goal_encoder_vpu_kernel(g_ref, w_ref, b_ref, o_ref):
    # g_ref: [tm, Dg]  w_ref: [Dg, Do_pad]  b_ref: [1, Do_pad]  o_ref: [tm, Do_pad]
    # Unrolled rank-1 updates on the VPU (exact f32 FMA); no MXU push/drain.
    g = g_ref[...]
    w = w_ref[...]
    acc = b_ref[...] + g[:, 0:1] * w[0:1, :]            # [tm, Do_pad] via broadcast
    for k in range(1, g.shape[1]):                       # static unroll, Dg is tiny
        acc = acc + g[:, k:k + 1] * w[k:k + 1, :]
    o_ref[...] = acc.astype(o_ref.dtype)


def _goal_encoder_mxu_kernel(g_ref, w_ref, b_ref, o_ref):
    # Fallback for larger goal_dim: MXU matmul, f32 accumulation.
    acc = jnp.dot(g_ref[...], w_ref[...], preferred_element_type=jnp.float32)
    o_ref[...] = (acc + b_ref[...]).astype(o_ref.dtype)


@functools.partial(jax.jit, static_argnames=("out_dim",))
def goal_encoder_apply(goals, w_t, b2d, out_dim):
    """goals: [B, goal_dim] (any float dtype); w_t/b2d from prepare_goal_encoder_params.
    Returns [B, out_dim] f32, matching torch.nn.Linear(goal_dim, out_dim)."""
    goals = goals.astype(jnp.float32)
    B, Dg = goals.shape
    Dg_w, Do_pad = w_t.shape
    assert Dg == Dg_w

    # Batch tile: multiple of the f32 sublane (8), capped at 512.
    tm = min(_MAX_TM, _round_up(B, _SUBLANE))
    B_pad = _round_up(B, tm)
    if B_pad != B:
        goals = jnp.pad(goals, ((0, B_pad - B), (0, 0)))

    kernel = (_goal_encoder_vpu_kernel if Dg <= _VPU_K_MAX
              else _goal_encoder_mxu_kernel)

    out_padded = pl.pallas_call(
        kernel,
        out_shape=jax.ShapeDtypeStruct((B_pad, Do_pad), jnp.float32),
        grid=(B_pad // tm,),
        in_specs=[
            pl.BlockSpec((tm, Dg), lambda i: (i, 0)),       # goals: streamed
            pl.BlockSpec((Dg, Do_pad), lambda i: (0, 0)),   # weight: resident
            pl.BlockSpec((1, Do_pad), lambda i: (0, 0)),    # bias:   resident
        ],
        out_specs=pl.BlockSpec((tm, Do_pad), lambda i: (i, 0)),
        compiler_params=pltpu.CompilerParams(
            dimension_semantics=("parallel",),              # shard batch tiles (v7x 2 TCs)
        ),
    )(goals, w_t, b2d)

    # Slice away the lane/batch padding (fused by XLA inside this jit).
    return out_padded[:B, :out_dim]


if __name__ == "__main__":
    # GoalEncoder(goal_dim, output_size) == nn.Linear(goal_dim, output_size)
    goal_dim = 4
    output_size = 32
    batch = 8

    key = jax.random.PRNGKey(0)
    k_g, k_w, k_b = jax.random.split(key, 3)

    goals = jax.random.normal(k_g, (batch, goal_dim), dtype=jnp.float32)
    # Deterministic "nn.Linear"-style parameters (synthetic, not a checkpoint).
    bound = 1.0 / (goal_dim ** 0.5)
    weight = jax.random.uniform(k_w, (output_size, goal_dim),
                                minval=-bound, maxval=bound, dtype=jnp.float32)
    bias = jax.random.uniform(k_b, (output_size,),
                              minval=-bound, maxval=bound, dtype=jnp.float32)

    # One-time parameter prep (hoisted out of the per-call path).
    w_t, b2d, out_dim = prepare_goal_encoder_params(weight, bias)

    out = goal_encoder_apply(goals, w_t, b2d, out_dim)
    out = jax.block_until_ready(out)

    # Reference check against plain JAX (same math as torch.nn.Linear).
    ref = goals @ weight.T + bias
    assert out.shape == (batch, output_size)
    assert jnp.allclose(out, ref, atol=1e-5, rtol=1e-5)

    # TODO(synk): from_numpy_to_tensor / device plumbing is host-side glue with no
    # kernel equivalent; a production path should fuse this tiny linear into its
    # consumer rather than paying a standalone dispatch.
    print("KERNEL_OK")
</pallas_src>

<mosaic_0001>
module attributes {stable_mosaic.version = 11 : i64} {
  func.func @_goal_encoder_vpu_kernel(%arg0: i32, %arg1: memref<8x4xf32, #tpu.memory_space<vmem>>, %arg2: memref<4x128xf32, #tpu.memory_space<vmem>>, %arg3: memref<1x128xf32, #tpu.memory_space<vmem>>, %arg4: memref<8x128xf32, #tpu.memory_space<vmem>>) attributes {dimension_semantics = [#tpu.dimension_semantics<parallel>], iteration_bounds = array<i64: 1>, scalar_prefetch = 0 : i64, scratch_operands = 0 : i64, tpu.core_type = #tpu.core_type<tc>, window_params = [{transform_indices = @transform_0, window_bounds = array<i64: 8, 4>}, {pipeline_mode = #tpu.pipeline_mode<synchronous>, transform_indices = @transform_1, window_bounds = array<i64: 4, 128>}, {pipeline_mode = #tpu.pipeline_mode<synchronous>, transform_indices = @transform_2, window_bounds = array<i64: 1, 128>}, {transform_indices = @transform_3, window_bounds = array<i64: 8, 128>}]} {
    %c0 = arith.constant 0 : index
    %c0_0 = arith.constant 0 : index
    %0 = vector.load %arg1[%c0, %c0_0] : memref<8x4xf32, #tpu.memory_space<vmem>>, vector<8x4xf32>
    %c0_1 = arith.constant 0 : index
    %c0_2 = arith.constant 0 : index
    %1 = vector.load %arg2[%c0_1, %c0_2] : memref<4x128xf32, #tpu.memory_space<vmem>>, vector<4x128xf32>
    %c0_3 = arith.constant 0 : index
    %c0_4 = arith.constant 0 : index
    %2 = vector.load %arg3[%c0_3, %c0_4] : memref<1x128xf32, #tpu.memory_space<vmem>>, vector<1x128xf32>
    %3 = vector.extract_strided_slice %0 {offsets = [0, 0], sizes = [8, 1], strides = [1, 1]} : vector<8x4xf32> to vector<8x1xf32>
    %4 = vector.extract_strided_slice %1 {offsets = [0, 0], sizes = [1, 128], strides = [1, 1]} : vector<4x128xf32> to vector<1x128xf32>
    %5 = vector.broadcast %3 : vector<8x1xf32> to vector<8x128xf32>
    %6 = vector.broadcast %4 : vector<1x128xf32> to vector<8x128xf32>
    %7 = arith.mulf %5, %6 : vector<8x128xf32>
    %8 = vector.broadcast %2 : vector<1x128xf32> to vector<8x128xf32>
    %9 = arith.addf %8, %7 : vector<8x128xf32>
    %10 = vector.extract_strided_slice %0 {offsets = [0, 1], sizes = [8, 1], strides = [1, 1]} : vector<8x4xf32> to vector<8x1xf32>
    %11 = vector.extract_strided_slice %1 {offsets = [1, 0], sizes = [1, 128], strides = [1, 1]} : vector<4x128xf32> to vector<1x128xf32>
    %12 = vector.broadcast %10 : vector<8x1xf32> to vector<8x128xf32>
    %13 = vector.broadcast %11 : vector<1x128xf32> to vector<8x128xf32>
    %14 = arith.mulf %12, %13 : vector<8x128xf32>
    %15 = arith.addf %9, %14 : vector<8x128xf32>
    %16 = vector.extract_strided_slice %0 {offsets = [0, 2], sizes = [8, 1], strides = [1, 1]} : vector<8x4xf32> to vector<8x1xf32>
    %17 = vector.extract_strided_slice %1 {offsets = [2, 0], sizes = [1, 128], strides = [1, 1]} : vector<4x128xf32> to vector<1x128xf32>
    %18 = vector.broadcast %16 : vector<8x1xf32> to vector<8x128xf32>
    %19 = vector.broadcast %17 : vector<1x128xf32> to vector<8x128xf32>
    %20 = arith.mulf %18, %19 : vector<8x128xf32>
    %21 = arith.addf %15, %20 : vector<8x128xf32>
    %22 = vector.extract_strided_slice %0 {offsets = [0, 3], sizes = [8, 1], strides = [1, 1]} : vector<8x4xf32> to vector<8x1xf32>
    %23 = vector.extract_strided_slice %1 {offsets = [3, 0], sizes = [1, 128], strides = [1, 1]} : vector<4x128xf32> to vector<1x128xf32>
    %24 = vector.broadcast %22 : vector<8x1xf32> to vector<8x128xf32>
    %25 = vector.broadcast %23 : vector<1x128xf32> to vector<8x128xf32>
    %26 = arith.mulf %24, %25 : vector<8x128xf32>
    %27 = arith.addf %21, %26 : vector<8x128xf32>
    %c0_5 = arith.constant 0 : index
    %c0_6 = arith.constant 0 : index
    %28 = vector.load %arg4[%c0_5, %c0_6] : memref<8x128xf32, #tpu.memory_space<vmem>>, vector<8x128xf32>
    tpu.vector_store %arg4[%c0_5, %c0_6], %27 {strides = array<i32>} : memref<8x128xf32, #tpu.memory_space<vmem>>, vector<8x128xf32>,
    return
  }
  func.func @transform_0(%arg0: i32) -> (i32, i32) {
    %c0_i32 = arith.constant 0 : i32
    %c0_i32_0 = arith.constant 0 : i32
    return %arg0, %c0_i32 : i32, i32
  }
  func.func @transform_1(%arg0: i32) -> (i32, i32) {
    %c0_i32 = arith.constant 0 : i32
    %c0_i32_0 = arith.constant 0 : i32
    %c0_i32_1 = arith.constant 0 : i32
    return %c0_i32, %c0_i32_0 : i32, i32
  }
  func.func @transform_2(%arg0: i32) -> (i32, i32) {
    %c0_i32 = arith.constant 0 : i32
    %c0_i32_0 = arith.constant 0 : i32
    %c0_i32_1 = arith.constant 0 : i32
    return %c0_i32, %c0_i32_0 : i32, i32
  }
  func.func @transform_3(%arg0: i32) -> (i32, i32) {
    %c0_i32 = arith.constant 0 : i32
    %c0_i32_0 = arith.constant 0 : i32
    return %arg0, %c0_i32 : i32, i32
  }
}

</mosaic_0001>

<llo_original>
// kernel: goal_encoder_apply.1
$region0: #{goal_encoder_apply.1}
  #allocation0 [shape = 'u32[]', space=smem, size = 0x4, offset = 0x4, fixed_abs, tag = 'smem constant byte address 0x4 - core index']
  #allocation1 [shape = 'u32[72,128]{1,0:T(1,128)}', space=vmem, size = 0x9000, scoped, tag = 'internal scratch']
  %s0 = inlined_call_operand.vmem [shape: f32[8,4], index: 0, kind: input, shape index: {}]
  %s1 = inlined_call_operand.vmem [shape: f32[4,128], index: 1, kind: input, shape index: {}]
  %s2 = inlined_call_operand.vmem [shape: f32[1,128], index: 2, kind: input, shape index: {}]
  %s3 = inlined_call_operand.hbm [shape: f32[8,128], index: 3, kind: output, shape index: {}]
  %s4 = sld [smem:[#allocation0]]
  $region22: #{goal_encoder_apply.1} parent=0
    _
  %s6 = ssub.s32 1, %s4
  %s7 = scalar_select 0, %s6, %s4
  $region1: #{goal_encoder_apply.1} parent=0
    #allocation2 [shape = 'u8[4096]{0}', space=vmem, size = 0x1000, scoped, tag = 'output window, operand 0, single buffered']
    #allocation3 [shape = 's32[1]{0}', space=sflag, size = 0x4, scoped, tag = 'scoped memory for goal_encoder_apply.1']
    %8 = vsyncpa [#allocation3], 0
    // Predicated region
    $region2: #{goal_encoder_apply.1} parent=1 // pred_check
      _
    $region3: #{goal_encoder_apply.1} parent=1 // pred_check_branch
      %10 = sbr.rel (0) target = $region5
    $region4: #{goal_encoder_apply.1} parent=1 // pred_region
      _
    $region5: #{goal_encoder_apply.1} parent=1 // pred_fallthru
      _
    // Predicated region
    $region6: #{goal_encoder_apply.1} parent=1 // pred_check
      _
    $region7: #{goal_encoder_apply.1} parent=1 // pred_check_branch
      %12 = sbr.rel (0) target = $region9
    $region8: #{goal_encoder_apply.1} parent=1 // pred_region
      _
    $region9: #{goal_encoder_apply.1} parent=1 // pred_fallthru
      _
    // Predicated region
    $region10: #{goal_encoder_apply.1} parent=1 // pred_check
      _
    $region11: #{goal_encoder_apply.1} parent=1 // pred_check_branch
      %14 = sbr.rel (0) target = $region13
    $region12: #{goal_encoder_apply.1} parent=1 // pred_region
      _
    $region13: #{goal_encoder_apply.1} parent=1 // pred_fallthru
      _
    %v15 = vld [vmem:[%s0] sm:$0xff]
    %v16 = vld [vmem:[%s1] sm:$0xf]
    %v17 = vld [vmem:[%s2] sm:$0x1]
    %19 = vset.pattern.permute.xlu0 0
    %20 = vperm.xlu0 %19, %v15
    %v21 = vpop.permute.xlu0 %20
    %v23 = vperm.slane %v16, 0
    %v24 = vmul.f32 %v21, %v23
    %v26 = vperm.slane %v17, 0
    %v28 = vadd.f32 %v26, %v24
    %29 = vset.pattern.permute.xlu0 1
    %30 = vperm.xlu0 %29, %v15
    %v31 = vpop.permute.xlu0 %30
    %v33 = vperm.slane %v16, 1
    %v34 = vmul.f32 %v31, %v33
    %v35 = vadd.f32 %v28, %v34
    %36 = vset.pattern.permute.xlu0 2
    %37 = vperm.xlu0 %36, %v15
    %v38 = vpop.permute.xlu0 %37
    %v40 = vperm.slane %v16, 2
    %v41 = vmul.f32 %v38, %v40
    %v42 = vadd.f32 %v35, %v41
    %43 = vset.pattern.permute.xlu0 3
    %44 = vperm.xlu0 %43, %v15
    %v45 = vpop.permute.xlu0 %44
    %v47 = vperm.slane %v16, 3
    %v48 = vmul.f32 %v45, %v47
    %v49 = vadd.f32 %v42, %v48
    %50 = vst [vmem:[#allocation2] sm:$0xff] %v49
    // Predicated region
    $region14: #{goal_encoder_apply.1} parent=1 // pred_check
      _
    $region15: #{goal_encoder_apply.1} parent=1 // pred_check_branch
      %52 = sbr.rel (0) target = $region17
    $region16: #{goal_encoder_apply.1} parent=1 // pred_region
      %54 = vsyncadd [#allocation3], 0
      %s56 = sshll.u32 [#allocation2], 4
      %s57 = int_to_ptr.vmem [resolvable:$true] %s56
      %s58 = sshll.u32 %s3, 4
      %s59 = int_to_ptr.hbm [resolvable:$true] %s58
      %61 = dma.vmem_to_hbm [thread:$0]  %s57, 128, %s59, [#allocation3]
    $region17: #{goal_encoder_apply.1} parent=1 // pred_fallthru
      _
    // Predicated region
    $region18: #{goal_encoder_apply.1} parent=1 // pred_check
      _
    $region19: #{goal_encoder_apply.1} parent=1 // pred_check_branch
      %63 = sbr.rel (0) target = $region21
    $region20: #{goal_encoder_apply.1} parent=1 // pred_region
      %65 = dma.done [#allocation3], 128
    $region21: #{goal_encoder_apply.1} parent=1 // pred_fallthru
      _
    %66 = vsyncpa [#allocation3], 1

</llo_original>
